<compile_context>
chip_gen: v5e
topology: v5e:2x2
jax: 0.10.0
libtpu: 0.0.40
codegen_flags: <defaults>
</compile_context>

<pallas_src>
import jax
import jax.numpy as jnp
from jax.experimental import pallas as pl
from jax.experimental.pallas import tpu as pltpu


LN_EPS = 1e-12  # BERT layer_norm_eps default


def _round_up(x, m):
    return ((x + m - 1) // m) * m


def _gelu_erf(x):
    # transformers ACT2FN["gelu"] == exact (erf-based) GELU
    return 0.5 * x * (1.0 + jax.lax.erf(x * (1.0 / jnp.sqrt(2.0).astype(x.dtype))))


# ---------------------------------------------------------------------------
# Kernel 1: MLM head  =  LayerNorm(gelu(x @ Wd + bd)) @ Wdec + bdec
# grid = (Mp//tm, Vp//tv); transform computed once per row tile (j == 0),
# decoder matmul per vocab tile in bf16 (f32 accumulation).
# ---------------------------------------------------------------------------
def mlm_head_kernel(x_ref, wd_ref, bd_ref, g_ref, b_ref, wdec_ref, bdec_ref,
                    out_ref, h_scratch):
    j = pl.program_id(1)

    @pl.when(j == 0)
    def _():
        x = x_ref[...]                                            # (tm, H) f32
        h = jnp.dot(x, wd_ref[...], preferred_element_type=jnp.float32)
        h = h + bd_ref[...]
        h = _gelu_erf(h)
        mean = jnp.mean(h, axis=-1, keepdims=True)
        centered = h - mean
        var = jnp.mean(centered * centered, axis=-1, keepdims=True)
        h = centered * jax.lax.rsqrt(var + LN_EPS)
        h = h * g_ref[...] + b_ref[...]
        h_scratch[...] = h.astype(h_scratch.dtype)                # bf16 for MXU

    logits = jnp.dot(h_scratch[...], wdec_ref[...],
                     preferred_element_type=jnp.float32)          # (tm, tv) f32
    out_ref[...] = (logits + bdec_ref[...]).astype(out_ref.dtype)


def mlm_head(seq_flat, w_dense, b_dense, ln_gamma, ln_beta, w_dec, b_dec,
             *, tm=256, tv=2048):
    M, H = seq_flat.shape
    V = w_dec.shape[1]

    # Row tile a multiple of 16 (bf16 scratch sublane packing), vocab tile a
    # multiple of 128 (lane-dense stores). Clamp to padded problem size.
    tm = min(tm, _round_up(M, 16))
    tv = min(tv, _round_up(V, 128))
    Mp = _round_up(M, tm)
    Vp = _round_up(V, tv)

    x = seq_flat
    if Mp != M:
        x = jnp.pad(x, ((0, Mp - M), (0, 0)))

    # Store decoder weights in bf16 in HBM: halves the dominant weight-stream
    # bandwidth and hits the bf16 MXU path; accumulation stays f32 in-kernel.
    w_dec_bf16 = w_dec.astype(jnp.bfloat16)
    b_dec_p = b_dec
    if Vp != V:
        w_dec_bf16 = jnp.pad(w_dec_bf16, ((0, 0), (0, Vp - V)))
        b_dec_p = jnp.pad(b_dec_p, ((0, 0), (0, Vp - V)))

    grid_m = Mp // tm
    grid_v = Vp // tv

    cost = pl.CostEstimate(
        flops=2 * Mp * H * H + 2 * Mp * H * Vp,
        transcendentals=Mp * H,
        bytes_accessed=(4 * Mp * H          # activations in
                        + 4 * H * H          # dense weight
                        + 3 * 4 * H          # dense bias + LN params
                        + 2 * H * Vp * grid_m  # decoder weights streamed per row tile
                        + 2 * Vp             # decoder bias
                        + 4 * Mp * Vp),      # logits out
    )

    out = pl.pallas_call(
        mlm_head_kernel,
        out_shape=jax.ShapeDtypeStruct((Mp, Vp), jnp.float32),
        grid=(grid_m, grid_v),
        in_specs=[
            pl.BlockSpec((tm, H), lambda i, j: (i, 0)),    # activations (row tile)
            pl.BlockSpec((H, H), lambda i, j: (0, 0)),     # dense weight
            pl.BlockSpec((1, H), lambda i, j: (0, 0)),     # dense bias
            pl.BlockSpec((1, H), lambda i, j: (0, 0)),     # LN gamma
            pl.BlockSpec((1, H), lambda i, j: (0, 0)),     # LN beta
            pl.BlockSpec((H, tv), lambda i, j: (0, j)),    # decoder weight tile
            pl.BlockSpec((1, tv), lambda i, j: (0, j)),    # decoder bias tile
        ],
        out_specs=pl.BlockSpec((tm, tv), lambda i, j: (i, j)),
        scratch_shapes=[pltpu.VMEM((tm, H), jnp.bfloat16)],  # transformed rows
        compiler_params=pltpu.CompilerParams(
            dimension_semantics=("parallel", "arbitrary"),
            vmem_limit_bytes=64 * 1024 * 1024,
        ),
        cost_estimate=cost,
    )(x, w_dense, b_dense, ln_gamma, ln_beta, w_dec_bf16, b_dec_p)

    return out[:M, :V]


# ---------------------------------------------------------------------------
# Kernel 2: NSP head  =  pooled @ Wseq + bseq   ->  [B, 2]
# Output padded to 128 lanes inside the kernel (no masked partial stores).
# ---------------------------------------------------------------------------
def nsp_head_kernel(x_ref, w_ref, b_ref, out_ref):
    logits = jnp.dot(x_ref[...], w_ref[...], preferred_element_type=jnp.float32)
    out_ref[...] = (logits + b_ref[...]).astype(out_ref.dtype)


def nsp_head(pooled, w_seq, b_seq):
    B, H = pooled.shape
    C = w_seq.shape[1]  # 2
    Cp = max(128, _round_up(C, 128))  # lane-dense output
    w_p = jnp.pad(w_seq, ((0, 0), (0, Cp - C)))
    b_p = jnp.pad(b_seq, ((0, 0), (0, Cp - C)))
    out = pl.pallas_call(
        nsp_head_kernel,
        out_shape=jax.ShapeDtypeStruct((B, Cp), jnp.float32),
        grid=(1,),
        in_specs=[
            pl.BlockSpec((B, H), lambda i: (0, 0)),
            pl.BlockSpec((H, Cp), lambda i: (0, 0)),
            pl.BlockSpec((1, Cp), lambda i: (0, 0)),
        ],
        out_specs=pl.BlockSpec((B, Cp), lambda i: (0, 0)),
        cost_estimate=pl.CostEstimate(
            flops=2 * B * H * Cp, transcendentals=0,
            bytes_accessed=4 * (B * H + H * Cp + Cp + B * Cp)),
    )(pooled, w_p, b_p)
    return out[:, :C]


# ---------------------------------------------------------------------------
# Module wrapper
# ---------------------------------------------------------------------------
def bert2d_pretraining_heads(sequence_output, pooled_output, params,
                             *, tm=256, tv=2048):
    B, S, H = sequence_output.shape
    seq_flat = sequence_output.reshape(B * S, H)
    pred_flat = mlm_head(
        seq_flat,
        params["w_dense"], params["b_dense"],
        params["ln_gamma"], params["ln_beta"],
        params["w_dec"], params["b_dec"],
        tm=tm, tv=tv,
    )
    prediction_scores = pred_flat.reshape(B, S, -1)
    seq_relationship_score = nsp_head(
        pooled_output, params["w_seq"], params["b_seq"])
    return prediction_scores, seq_relationship_score


def reference_heads(sequence_output, pooled_output, params):
    h = sequence_output @ params["w_dense"] + params["b_dense"][0]
    h = _gelu_erf(h)
    mean = jnp.mean(h, axis=-1, keepdims=True)
    var = jnp.mean((h - mean) ** 2, axis=-1, keepdims=True)
    h = (h - mean) / jnp.sqrt(var + LN_EPS)
    h = h * params["ln_gamma"][0] + params["ln_beta"][0]
    pred = h @ params["w_dec"] + params["b_dec"][0]
    nsp = pooled_output @ params["w_seq"] + params["b_seq"][0]
    return pred, nsp


if __name__ == "__main__":
    # Small, TPU-friendly config (real BERT: H=768/1024, V~30k handled by the
    # same V-tiled kernel with the default tm=256 / tv=2048 tiles).
    B, S, H, V = 2, 16, 128, 512

    key = jax.random.PRNGKey(0)
    keys = jax.random.split(key, 10)

    scale = 0.02
    params = {
        "w_dense": scale * jax.random.normal(keys[0], (H, H), jnp.float32),
        "b_dense": 0.01 * jax.random.normal(keys[1], (1, H), jnp.float32),
        "ln_gamma": 1.0 + 0.05 * jax.random.normal(keys[2], (1, H), jnp.float32),
        "ln_beta": 0.01 * jax.random.normal(keys[3], (1, H), jnp.float32),
        "w_dec": scale * jax.random.normal(keys[4], (H, V), jnp.float32),
        "b_dec": 0.01 * jax.random.normal(keys[5], (1, V), jnp.float32),
        "w_seq": scale * jax.random.normal(keys[6], (H, 2), jnp.float32),
        "b_seq": 0.01 * jax.random.normal(keys[7], (1, 2), jnp.float32),
    }

    sequence_output = jax.random.normal(keys[8], (B, S, H), jnp.float32)
    pooled_output = jax.random.normal(keys[9], (B, H), jnp.float32)

    # Plain-JAX (f32) reference of the original module semantics.
    pred_ref, nsp_ref = reference_heads(sequence_output, pooled_output, params)

    # Small tiles to exercise the full 2-D grid (multiple row tiles AND
    # multiple vocab tiles, i.e. the pl.when-gated transform + scratch reuse).
    pred, nsp = bert2d_pretraining_heads(
        sequence_output, pooled_output, params, tm=16, tv=128)
    pred = jax.block_until_ready(pred)
    nsp = jax.block_until_ready(nsp)

    assert pred.shape == (B, S, V) and nsp.shape == (B, 2)
    # Decoder matmul runs in bf16 (f32 accumulation) -> loose-but-tight-enough
    # tolerance vs the f32 reference.
    assert jnp.allclose(pred, pred_ref, atol=2e-2, rtol=2e-2)
    assert jnp.allclose(nsp, nsp_ref, atol=1e-3, rtol=1e-3)

    # Also run with the production-default tiles (clamped to this small shape).
    pred2, nsp2 = bert2d_pretraining_heads(sequence_output, pooled_output, params)
    pred2 = jax.block_until_ready(pred2)
    nsp2 = jax.block_until_ready(nsp2)
    assert jnp.allclose(pred2, pred_ref, atol=2e-2, rtol=2e-2)
    assert jnp.allclose(nsp2, nsp_ref, atol=1e-3, rtol=1e-3)

    print("KERNEL_OK")
</pallas_src>

<mosaic_0001>
module attributes {stable_mosaic.version = 11 : i64} {
  func.func @mlm_head_kernel(%arg0: i32, %arg1: i32, %arg2: memref<16x128xf32, #tpu.memory_space<vmem>>, %arg3: memref<128x128xf32, #tpu.memory_space<vmem>>, %arg4: memref<1x128xf32, #tpu.memory_space<vmem>>, %arg5: memref<1x128xf32, #tpu.memory_space<vmem>>, %arg6: memref<1x128xf32, #tpu.memory_space<vmem>>, %arg7: memref<128x128xbf16, #tpu.memory_space<vmem>>, %arg8: memref<1x128xf32, #tpu.memory_space<vmem>>, %arg9: memref<16x128xf32, #tpu.memory_space<vmem>>, %arg10: memref<16x128xbf16, #tpu.memory_space<vmem>>) attributes {dimension_semantics = [#tpu.dimension_semantics<parallel>, #tpu.dimension_semantics<arbitrary>], iteration_bounds = array<i64: 2, 4>, scalar_prefetch = 0 : i64, scratch_operands = 1 : i64, tpu.core_type = #tpu.core_type<tc>, window_params = [{transform_indices = @transform_0, window_bounds = array<i64: 16, 128>}, {pipeline_mode = #tpu.pipeline_mode<synchronous>, transform_indices = @transform_1, window_bounds = array<i64: 128, 128>}, {pipeline_mode = #tpu.pipeline_mode<synchronous>, transform_indices = @transform_2, window_bounds = array<i64: 1, 128>}, {pipeline_mode = #tpu.pipeline_mode<synchronous>, transform_indices = @transform_3, window_bounds = array<i64: 1, 128>}, {pipeline_mode = #tpu.pipeline_mode<synchronous>, transform_indices = @transform_4, window_bounds = array<i64: 1, 128>}, {transform_indices = @transform_5, window_bounds = array<i64: 128, 128>}, {transform_indices = @transform_6, window_bounds = array<i64: 1, 128>}, {transform_indices = @transform_7, window_bounds = array<i64: 16, 128>}]} {
    %c0_i32 = arith.constant 0 : i32
    %0 = arith.cmpi eq, %arg1, %c0_i32 : i32
    %1 = arith.extui %0 : i1 to i32
    %c0_i32_0 = arith.constant 0 : i32
    %2 = arith.cmpi ne, %1, %c0_i32_0 : i32
    scf.if %2 {
      %c0_8 = arith.constant 0 : index
      %c0_9 = arith.constant 0 : index
      %10 = vector.load %arg2[%c0_8, %c0_9] : memref<16x128xf32, #tpu.memory_space<vmem>>, vector<16x128xf32>
      %c0_10 = arith.constant 0 : index
      %c0_11 = arith.constant 0 : index
      %11 = vector.load %arg3[%c0_10, %c0_11] : memref<128x128xf32, #tpu.memory_space<vmem>>, vector<128x128xf32>
      %cst_12 = arith.constant dense<0.000000e+00> : vector<16x128xf32>
      %12 = tpu.matmul %10, %11, %cst_12 {dimension_numbers = #tpu.dot_dimension_numbers<[1], [0], [0], [1], [0, 0, 1, 1], [], []>} : vector<16x128xf32>, vector<128x128xf32>, vector<16x128xf32> -> vector<16x128xf32>
      %c0_13 = arith.constant 0 : index
      %c0_14 = arith.constant 0 : index
      %13 = vector.load %arg4[%c0_13, %c0_14] : memref<1x128xf32, #tpu.memory_space<vmem>>, vector<1x128xf32>
      %14 = vector.broadcast %13 : vector<1x128xf32> to vector<16x128xf32>
      %15 = arith.addf %12, %14 : vector<16x128xf32>
      %cst_15 = arith.constant 5.000000e-01 : f32
      %16 = vector.broadcast %cst_15 : f32 to vector<16x128xf32>
      %17 = arith.mulf %16, %15 : vector<16x128xf32>
      %cst_16 = arith.constant 2.000000e+00 : f32
      %18 = math.sqrt %cst_16 : f32
      %cst_17 = arith.constant 1.000000e+00 : f32
      %19 = arith.divf %cst_17, %18 : f32
      %20 = vector.broadcast %19 : f32 to vector<16x128xf32>
      %21 = arith.mulf %15, %20 : vector<16x128xf32>
      %22 = math.erf %21 : vector<16x128xf32>
      %cst_18 = arith.constant 1.000000e+00 : f32
      %23 = vector.broadcast %cst_18 : f32 to vector<16x128xf32>
      %24 = arith.addf %23, %22 : vector<16x128xf32>
      %25 = arith.mulf %17, %24 : vector<16x128xf32>
      %cst_19 = arith.constant dense<0.000000e+00> : vector<16xf32>
      %26 = vector.multi_reduction <add>, %25, %cst_19 [1] : vector<16x128xf32> to vector<16xf32>
      %27 = vector.shape_cast %26 : vector<16xf32> to vector<16x1xf32>
      %cst_20 = arith.constant 1.280000e+02 : f32
      %28 = vector.broadcast %cst_20 : f32 to vector<16x1xf32>
      %29 = arith.divf %27, %28 : vector<16x1xf32>
      %30 = vector.broadcast %29 : vector<16x1xf32> to vector<16x128xf32>
      %31 = arith.subf %25, %30 : vector<16x128xf32>
      %32 = arith.mulf %31, %31 : vector<16x128xf32>
      %cst_21 = arith.constant dense<0.000000e+00> : vector<16xf32>
      %33 = vector.multi_reduction <add>, %32, %cst_21 [1] : vector<16x128xf32> to vector<16xf32>
      %34 = vector.shape_cast %33 : vector<16xf32> to vector<16x1xf32>
      %cst_22 = arith.constant 1.280000e+02 : f32
      %35 = vector.broadcast %cst_22 : f32 to vector<16x1xf32>
      %36 = arith.divf %34, %35 : vector<16x1xf32>
      %cst_23 = arith.constant 9.99999996E-13 : f32
      %37 = vector.broadcast %cst_23 : f32 to vector<16x1xf32>
      %38 = arith.addf %36, %37 : vector<16x1xf32>
      %39 = math.rsqrt %38 : vector<16x1xf32>
      %40 = vector.broadcast %39 : vector<16x1xf32> to vector<16x128xf32>
      %41 = arith.mulf %31, %40 : vector<16x128xf32>
      %c0_24 = arith.constant 0 : index
      %c0_25 = arith.constant 0 : index
      %42 = vector.load %arg5[%c0_24, %c0_25] : memref<1x128xf32, #tpu.memory_space<vmem>>, vector<1x128xf32>
      %43 = vector.broadcast %42 : vector<1x128xf32> to vector<16x128xf32>
      %44 = arith.mulf %41, %43 : vector<16x128xf32>
      %c0_26 = arith.constant 0 : index
      %c0_27 = arith.constant 0 : index
      %45 = vector.load %arg6[%c0_26, %c0_27] : memref<1x128xf32, #tpu.memory_space<vmem>>, vector<1x128xf32>
      %46 = vector.broadcast %45 : vector<1x128xf32> to vector<16x128xf32>
      %47 = arith.addf %44, %46 : vector<16x128xf32>
      %48 = arith.truncf %47 : vector<16x128xf32> to vector<16x128xbf16>
      %c0_28 = arith.constant 0 : index
      %c0_29 = arith.constant 0 : index
      %49 = vector.load %arg10[%c0_28, %c0_29] : memref<16x128xbf16, #tpu.memory_space<vmem>>, vector<16x128xbf16>
      tpu.vector_store %arg10[%c0_28, %c0_29], %48 {strides = array<i32>} : memref<16x128xbf16, #tpu.memory_space<vmem>>, vector<16x128xbf16>,
    } else {
    }
    %c0 = arith.constant 0 : index
    %c0_1 = arith.constant 0 : index
    %3 = vector.load %arg10[%c0, %c0_1] : memref<16x128xbf16, #tpu.memory_space<vmem>>, vector<16x128xbf16>
    %c0_2 = arith.constant 0 : index
    %c0_3 = arith.constant 0 : index
    %4 = vector.load %arg7[%c0_2, %c0_3] : memref<128x128xbf16, #tpu.memory_space<vmem>>, vector<128x128xbf16>
    %cst = arith.constant dense<0.000000e+00> : vector<16x128xf32>
    %5 = tpu.matmul %3, %4, %cst {dimension_numbers = #tpu.dot_dimension_numbers<[1], [0], [0], [1], [0, 0, 1, 1], [], []>} : vector<16x128xbf16>, vector<128x128xbf16>, vector<16x128xf32> -> vector<16x128xf32>
    %c0_4 = arith.constant 0 : index
    %c0_5 = arith.constant 0 : index
    %6 = vector.load %arg8[%c0_4, %c0_5] : memref<1x128xf32, #tpu.memory_space<vmem>>, vector<1x128xf32>
    %7 = vector.broadcast %6 : vector<1x128xf32> to vector<16x128xf32>
    %8 = arith.addf %5, %7 : vector<16x128xf32>
    %c0_6 = arith.constant 0 : index
    %c0_7 = arith.constant 0 : index
    %9 = vector.load %arg9[%c0_6, %c0_7] : memref<16x128xf32, #tpu.memory_space<vmem>>, vector<16x128xf32>
    tpu.vector_store %arg9[%c0_6, %c0_7], %8 {strides = array<i32>} : memref<16x128xf32, #tpu.memory_space<vmem>>, vector<16x128xf32>,
    return
  }
  func.func @transform_0(%arg0: i32, %arg1: i32) -> (i32, i32) {
    %c0_i32 = arith.constant 0 : i32
    %c0_i32_0 = arith.constant 0 : i32
    return %arg0, %c0_i32 : i32, i32
  }
  func.func @transform_1(%arg0: i32, %arg1: i32) -> (i32, i32) {
    %c0_i32 = arith.constant 0 : i32
    %c0_i32_0 = arith.constant 0 : i32
    %c0_i32_1 = arith.constant 0 : i32
    return %c0_i32, %c0_i32_0 : i32, i32
  }
  func.func @transform_2(%arg0: i32, %arg1: i32) -> (i32, i32) {
    %c0_i32 = arith.constant 0 : i32
    %c0_i32_0 = arith.constant 0 : i32
    %c0_i32_1 = arith.constant 0 : i32
    return %c0_i32, %c0_i32_0 : i32, i32
  }
  func.func @transform_3(%arg0: i32, %arg1: i32) -> (i32, i32) {
    %c0_i32 = arith.constant 0 : i32
    %c0_i32_0 = arith.constant 0 : i32
    %c0_i32_1 = arith.constant 0 : i32
    return %c0_i32, %c0_i32_0 : i32, i32
  }
  func.func @transform_4(%arg0: i32, %arg1: i32) -> (i32, i32) {
    %c0_i32 = arith.constant 0 : i32
    %c0_i32_0 = arith.constant 0 : i32
    %c0_i32_1 = arith.constant 0 : i32
    return %c0_i32, %c0_i32_0 : i32, i32
  }
  func.func @transform_5(%arg0: i32, %arg1: i32) -> (i32, i32) {
    %c0_i32 = arith.constant 0 : i32
    %c0_i32_0 = arith.constant 0 : i32
    return %c0_i32, %arg1 : i32, i32
  }
  func.func @transform_6(%arg0: i32, %arg1: i32) -> (i32, i32) {
    %c0_i32 = arith.constant 0 : i32
    %c0_i32_0 = arith.constant 0 : i32
    return %c0_i32, %arg1 : i32, i32
  }
  func.func @transform_7(%arg0: i32, %arg1: i32) -> (i32, i32) {
    %c0_i32 = arith.constant 0 : i32
    return %arg0, %arg1 : i32, i32
  }
}

</mosaic_0001>

<llo_original>
// kernel: tpu_custom_call.1
$region0: #{tpu_custom_call.1}
  #allocation0 [shape = 'u32[]', space=smem, size = 0x4, offset = 0x4, fixed_abs, tag = 'smem constant byte address 0x4 - core index']
  #allocation1 [shape = 'u32[72,128]{1,0:T(1,128)}', space=vmem, size = 0x9000, scoped, tag = 'internal scratch']
  #allocation2 [shape = 'bf16[16,128]{1,0:T(8,128)(2,1)}', space=vmem, size = 0x1000, scoped, tag = 'scratch operand']
  %s0 = inlined_call_operand.hbm [shape: f32[32,128], index: 0, kind: input, shape index: {}]
  %s1 = inlined_call_operand.hbm [shape: f32[128,128], index: 1, kind: input, shape index: {}]
  %s2 = inlined_call_operand.vmem [shape: f32[1,128], index: 2, kind: input, shape index: {}]
  %s3 = inlined_call_operand.hbm [shape: f32[1,128], index: 3, kind: input, shape index: {}]
  %s4 = inlined_call_operand.hbm [shape: f32[1,128], index: 4, kind: input, shape index: {}]
  %s5 = inlined_call_operand.hbm [shape: bf16[128,512], index: 5, kind: input, shape index: {}]
  %s6 = inlined_call_operand.vmem [shape: f32[1,512], index: 6, kind: input, shape index: {}]
  %s7 = inlined_call_operand.hbm [shape: f32[32,512], index: 7, kind: output, shape index: {}]
  %s8 = sld [smem:[#allocation0]]
  $region85: #{tpu_custom_call.1} parent=0
    _
  %s10 = ssub.s32 1, %s8
  %s11 = scalar_select 0, %s10, %s8
  $region1: #{tpu_custom_call.1} parent=0
    #allocation3 [shape = 'u8[16384]{0}', space=vmem, size = 0x4000, scoped, tag = 'input window, operand 0']
    #allocation4 [shape = 's32[2]{0}', space=sflag, size = 0x8, scoped, tag = 'scoped memory for tpu_custom_call.1']
    #allocation5 [shape = 's32[2]{0}', space=sflag, size = 0x8, scoped, tag = 'scoped memory for tpu_custom_call.1']
    #allocation6 [shape = 'u8[65536]{0}', space=vmem, size = 0x10000, scoped, tag = 'input window, operand 1, single buffered']
    #allocation7 [shape = 's32[1]{0}', space=sflag, size = 0x4, scoped, tag = 'scoped memory for tpu_custom_call.1']
    #allocation8 [shape = 'u8[512]{0}', space=vmem, size = 0x400, scoped, tag = 'input window, operand 3, single buffered']
    #allocation9 [shape = 'u8[512]{0}', space=vmem, size = 0x400, scoped, tag = 'input window, operand 4, single buffered']
    #allocation10 [shape = 's32[1]{0}', space=sflag, size = 0x4, scoped, tag = 'scoped memory for tpu_custom_call.1']
    #allocation11 [shape = 'u8[65536]{0}', space=vmem, size = 0x10000, scoped, tag = 'input window, operand 5']
    #allocation12 [shape = 'u8[16384]{0}', space=vmem, size = 0x4000, scoped, tag = 'output window, operand 0']
    %12 = vsyncpa [#allocation4], 0
    %s13 = scalar_lea.sflag [#allocation4], 1
    %14 = vsyncpa %s13, 0
    %15 = vsyncpa [#allocation7], 0
    %16 = vsyncpa [#allocation10], 0
    %17 = vsyncpa [#allocation5], 0
    %s18 = scalar_lea.sflag [#allocation5], 1
    %19 = vsyncpa %s18, 0
    loop: start=0, step=1, limit=10
    $region2: #{tpu_custom_call.1} parent=1 // loop_pre_header
      _
    $region3: #{tpu_custom_call.1} parent=1 // loop_header
      %s21 = sphi 0, %s25
      %p22 = scmp.ge.s32.totalorder %s21, 10
      %s28 = sphi 0, %s40
      %s29 = sphi 0, %s36
      %s30 = sphi 0, %s28
      %s31 = sphi 0, %s29
      %s32 = sphi 0, %s30
      %s33 = sphi 0, %s31
      %s43 = sphi 0, %s45
      %s46 = sphi 0, %s43
      %s47 = sphi 0, %s46
      %s63 = sphi 0, %s47
      %s67 = sphi 0, %s67
      %s69 = sphi 0, %s67
      %s70 = sphi 0, %s69
      %s84 = sphi 0, %s70
      %s88 = sphi 0, %s88
      %s90 = sphi 0, %s88
      %s91 = sphi 0, %s90
      %s105 = sphi 0, %s91
      %s109 = sphi 0, %s109
      %s111 = sphi 0, %s109
      %s112 = sphi 0, %s111
      %s126 = sphi 0, %s112
      %s130 = sphi 0, %s130
      %s132 = sphi 0, %s130
      %s133 = sphi 0, %s132
      %s147 = sphi 0, %s133
      %s153 = sphi 0, %s155
      %s156 = sphi 0, %s153
      %s157 = sphi 0, %s156
      %s173 = sphi 0, %s157
      %s179 = sphi 0, %s181
      %s182 = sphi 0, %s179
      %s183 = sphi 0, %s182
      %s199 = sphi 0, %s183
      %s207 = sphi 0, %s209
      %s210 = sphi 0, %s207
      %s211 = sphi 0, %s210
      %s227 = sphi 0, %s211
    $region4: #{tpu_custom_call.1} parent=1 // loop_header_branch
      %24 = sbr.rel (%p22) target = $region8
    $region5: #{tpu_custom_call.1} parent=1 // loop_body
      %s26 = ssub.s32 %s21, 1
      %s27 = ssub.s32 %s21, 2
      %s34 = sadd.s32 1, %s29
      %p35 = scmp.ge.s32.totalorder %s34, 4
      %s36 = scalar_select %p35, 0, %s34
      %s37 = sadd.s32 1, %s28
      %s38 = scalar_select %p35, %s37, %s28
      %p39 = scmp.ge.s32.totalorder %s38, 2
      %s40 = scalar_select %p39, 0, %s38
      %s41 = ssub.s32 %s28, %s40
      %p42 = scmp.eq.s32.totalorder %s41, 0
      %s44 = sadd.s32 %s43, 1
      %s45 = scalar_select %p42, %s43, %s44
      %p48 = pneg %p42
      %p49 = scmp.eq.s32.totalorder %s21, 7
      %p50 = por %p48, %p49
      %p51 = scmp.ne.s32.totalorder %s43, %s46
      %p52 = scmp.eq.s32.totalorder %s21, 0
      %p53 = por %p51, %p52
      %p54 = scmp.ne.s32.totalorder %s43, %s46
      %p55 = scmp.eq.s32.totalorder %s26, 7
      %p56 = por %p54, %p55
      %p57 = scmp.ne.s32.totalorder %s46, %s47
      %p58 = scmp.eq.s32.totalorder %s26, 0
      %p59 = por %p57, %p58
      %p60 = scmp.ne.s32.totalorder %s46, %s47
      %p61 = scmp.eq.s32.totalorder %s27, 7
      %p62 = por %p60, %p61
      %p64 = scmp.ne.s32.totalorder %s47, %s63
      %p65 = scmp.eq.s32.totalorder %s27, 0
      %p66 = por %p64, %p65
      %s68 = sadd.s32 %s67, 1
      %p71 = scmp.eq.s32.totalorder %s21, 7
      %p72 = scmp.ne.s32.totalorder %s67, %s69
      %p73 = scmp.eq.s32.totalorder %s21, 0
      %p74 = por %p72, %p73
      %p75 = scmp.ne.s32.totalorder %s67, %s69
      %p76 = scmp.eq.s32.totalorder %s26, 7
      %p77 = por %p75, %p76
      %p78 = scmp.ne.s32.totalorder %s69, %s70
      %p79 = scmp.eq.s32.totalorder %s26, 0
      %p80 = por %p78, %p79
      %p81 = scmp.ne.s32.totalorder %s69, %s70
      %p82 = scmp.eq.s32.totalorder %s27, 7
      %p83 = por %p81, %p82
      %p85 = scmp.ne.s32.totalorder %s70, %s84
      %p86 = scmp.eq.s32.totalorder %s27, 0
      %p87 = por %p85, %p86
      %s89 = sadd.s32 %s88, 1
      %p92 = scmp.eq.s32.totalorder %s21, 7
      %p93 = scmp.ne.s32.totalorder %s88, %s90
      %p94 = scmp.eq.s32.totalorder %s21, 0
      %p95 = por %p93, %p94
      %p96 = scmp.ne.s32.totalorder %s88, %s90
      %p97 = scmp.eq.s32.totalorder %s26, 7
      %p98 = por %p96, %p97
      %p99 = scmp.ne.s32.totalorder %s90, %s91
      %p100 = scmp.eq.s32.totalorder %s26, 0
      %p101 = por %p99, %p100
      %p102 = scmp.ne.s32.totalorder %s90, %s91
      %p103 = scmp.eq.s32.totalorder %s27, 7
      %p104 = por %p102, %p103
      %p106 = scmp.ne.s32.totalorder %s91, %s105
      %p107 = scmp.eq.s32.totalorder %s27, 0
      %p108 = por %p106, %p107
      %s110 = sadd.s32 %s109, 1
      %p113 = scmp.eq.s32.totalorder %s21, 7
      %p114 = scmp.ne.s32.totalorder %s109, %s111
      %p115 = scmp.eq.s32.totalorder %s21, 0
      %p116 = por %p114, %p115
      %p117 = scmp.ne.s32.totalorder %s109, %s111
      %p118 = scmp.eq.s32.totalorder %s26, 7
      %p119 = por %p117, %p118
      %p120 = scmp.ne.s32.totalorder %s111, %s112
      %p121 = scmp.eq.s32.totalorder %s26, 0
      %p122 = por %p120, %p121
      %p123 = scmp.ne.s32.totalorder %s111, %s112
      %p124 = scmp.eq.s32.totalorder %s27, 7
      %p125 = por %p123, %p124
      %p127 = scmp.ne.s32.totalorder %s112, %s126
      %p128 = scmp.eq.s32.totalorder %s27, 0
      %p129 = por %p127, %p128
      %s131 = sadd.s32 %s130, 1
      %p134 = scmp.eq.s32.totalorder %s21, 7
      %p135 = scmp.ne.s32.totalorder %s130, %s132
      %p136 = scmp.eq.s32.totalorder %s21, 0
      %p137 = por %p135, %p136
      %p138 = scmp.ne.s32.totalorder %s130, %s132
      %p139 = scmp.eq.s32.totalorder %s26, 7
      %p140 = por %p138, %p139
      %p141 = scmp.ne.s32.totalorder %s132, %s133
      %p142 = scmp.eq.s32.totalorder %s26, 0
      %p143 = por %p141, %p142
      %p144 = scmp.ne.s32.totalorder %s132, %s133
      %p145 = scmp.eq.s32.totalorder %s27, 7
      %p146 = por %p144, %p145
      %p148 = scmp.ne.s32.totalorder %s133, %s147
      %p149 = scmp.eq.s32.totalorder %s27, 0
      %p150 = por %p148, %p149
      %s151 = ssub.s32 %s29, %s36
      %p152 = scmp.eq.s32.totalorder %s151, 0
      %s154 = sadd.s32 %s153, 1
      %s155 = scalar_select %p152, %s153, %s154
      %p158 = pneg %p152
      %p159 = scmp.eq.s32.totalorder %s21, 7
      %p160 = por %p158, %p159
      %p161 = scmp.ne.s32.totalorder %s153, %s156
      %p162 = scmp.eq.s32.totalorder %s21, 0
      %p163 = por %p161, %p162
      %p164 = scmp.ne.s32.totalorder %s153, %s156
      %p165 = scmp.eq.s32.totalorder %s26, 7
      %p166 = por %p164, %p165
      %p167 = scmp.ne.s32.totalorder %s156, %s157
      %p168 = scmp.eq.s32.totalorder %s26, 0
      %p169 = por %p167, %p168
      %p170 = scmp.ne.s32.totalorder %s156, %s157
      %p171 = scmp.eq.s32.totalorder %s27, 7
      %p172 = por %p170, %p171
      %p174 = scmp.ne.s32.totalorder %s157, %s173
      %p175 = scmp.eq.s32.totalorder %s27, 0
      %p176 = por %p174, %p175
      %s177 = ssub.s32 %s29, %s36
      %p178 = scmp.eq.s32.totalorder %s177, 0
      %s180 = sadd.s32 %s179, 1
      %s181 = scalar_select %p178, %s179, %s180
      %p184 = pneg %p178
      %p185 = scmp.eq.s32.totalorder %s21, 7
      %p186 = por %p184, %p185
      %p187 = scmp.ne.s32.totalorder %s179, %s182
      %p188 = scmp.eq.s32.totalorder %s21, 0
      %p189 = por %p187, %p188
      %p190 = scmp.ne.s32.totalorder %s179, %s182
      %p191 = scmp.eq.s32.totalorder %s26, 7
      %p192 = por %p190, %p191
      %p193 = scmp.ne.s32.totalorder %s182, %s183
      %p194 = scmp.eq.s32.totalorder %s26, 0
      %p195 = por %p193, %p194
      %p196 = scmp.ne.s32.totalorder %s182, %s183
      %p197 = scmp.eq.s32.totalorder %s27, 7
      %p198 = por %p196, %p197
      %p200 = scmp.ne.s32.totalorder %s183, %s199
      %p201 = scmp.eq.s32.totalorder %s27, 0
      %p202 = por %p200, %p201
      %s203 = ssub.s32 %s28, %s40
      %s204 = ssub.s32 %s29, %s36
      %s205 = sor.u32 %s203, %s204
      %p206 = scmp.eq.s32.totalorder %s205, 0
      %s208 = sadd.s32 %s207, 1
      %s209 = scalar_select %p206, %s207, %s208
      %p212 = pneg %p206
      %p213 = scmp.eq.s32.totalorder %s21, 7
      %p214 = por %p212, %p213
      %p215 = scmp.ne.s32.totalorder %s207, %s210
      %p216 = scmp.eq.s32.totalorder %s21, 0
      %p217 = por %p215, %p216
      %p218 = scmp.ne.s32.totalorder %s207, %s210
      %p219 = scmp.eq.s32.totalorder %s26, 7
      %p220 = por %p218, %p219
      %p221 = scmp.ne.s32.totalorder %s210, %s211
      %p222 = scmp.eq.s32.totalorder %s26, 0
      %p223 = por %p221, %p222
      %p224 = scmp.ne.s32.totalorder %s210, %s211
      %p225 = scmp.eq.s32.totalorder %s27, 7
      %p226 = por %p224, %p225
      %p228 = scmp.ne.s32.totalorder %s211, %s227
      %p229 = scmp.eq.s32.totalorder %s27, 0
      %p230 = por %p228, %p229
      %p231 = scmp.le.s32.totalorder 1, %s21
      %p232 = scmp.lt.s32.totalorder %s21, 9
      %p233 = pnand %p231, %p232
      %p234 = pneg %p233
      // Predicated region
      $region9: #{tpu_custom_call.1} parent=5 // pred_check
        _
      $region10: #{tpu_custom_call.1} parent=5 // pred_check_branch
        %236 = sbr.rel (%p233) target = $region12
      $region11: #{tpu_custom_call.1} parent=5 // pred_region
        %s237 = ssub.s32 %s21, 1
        // Predicated region
        $region13: #{tpu_custom_call.1} parent=11 // pred_check
          %p238 = pneg %p80
        $region14: #{tpu_custom_call.1} parent=11 // pred_check_branch
          %240 = sbr.rel (%p238) target = $region16
        $region15: #{tpu_custom_call.1} parent=11 // pred_region
          %242 = vsyncadd [#allocation7], 0
          %s243 = sshll.u32 %s1, 4
          %s244 = int_to_ptr.hbm [resolvable:$true] %s243
          %s245 = sshll.u32 [#allocation6], 4
          %s246 = int_to_ptr.vmem [resolvable:$true] %s245
          %251 = dma.hbm_to_vmem [thread:$0]  %s244, 2048, %s246, [#allocation7], 128, 128, 8
        $region16: #{tpu_custom_call.1} parent=11 // pred_fallthru
          _
        // Predicated region
        $region17: #{tpu_custom_call.1} parent=11 // pred_check
          %p252 = pneg %p101
        $region18: #{tpu_custom_call.1} parent=11 // pred_check_branch
          %254 = sbr.rel (%p252) target = $region20
        $region19: #{tpu_custom_call.1} parent=11 // pred_region
          _
        $region20: #{tpu_custom_call.1} parent=11 // pred_fallthru
          _
        // Predicated region
        $region21: #{tpu_custom_call.1} parent=11 // pred_check
          %p255 = pneg %p122
        $region22: #{tpu_custom_call.1} parent=11 // pred_check_branch
          %257 = sbr.rel (%p255) target = $region24
        $region23: #{tpu_custom_call.1} parent=11 // pred_region
          %259 = vsyncadd [#allocation7], 0
          %s261 = sshll.u32 %s3, 4
          %s262 = int_to_ptr.hbm [resolvable:$true] %s261
          %s263 = sshll.u32 [#allocation8], 4
          %s264 = int_to_ptr.vmem [resolvable:$true] %s263
          %266 = dma.hbm_to_vmem [thread:$0]  %s262, 16, %s264, [#allocation7]
        $region24: #{tpu_custom_call.1} parent=11 // pred_fallthru
          _
        // Predicated region
        $region25: #{tpu_custom_call.1} parent=11 // pred_check
          %p267 = pneg %p143
        $region26: #{tpu_custom_call.1} parent=11 // pred_check_branch
          %269 = sbr.rel (%p267) target = $region28
        $region27: #{tpu_custom_call.1} parent=11 // pred_region
          %271 = vsyncadd [#allocation10], 0
          %s273 = sshll.u32 %s4, 4
          %s274 = int_to_ptr.hbm [resolvable:$true] %s273
          %s275 = sshll.u32 [#allocation9], 4
          %s276 = int_to_ptr.vmem [resolvable:$true] %s275
          %278 = dma.hbm_to_vmem [thread:$0]  %s274, 16, %s276, [#allocation10]
        $region28: #{tpu_custom_call.1} parent=11 // pred_fallthru
          _
      $region12: #{tpu_custom_call.1} parent=5 // pred_fallthru
        _
      %p279 = scmp.lt.s32.totalorder %s21, 8
      // Predicated region
      $region29: #{tpu_custom_call.1} parent=5 // pred_check
        %p280 = pneg %p279
      $region30: #{tpu_custom_call.1} parent=5 // pred_check_branch
        %282 = sbr.rel (%p280) target = $region32
      $region31: #{tpu_custom_call.1} parent=5 // pred_region
        // Predicated region
        $region33: #{tpu_custom_call.1} parent=31 // pred_check
          %p283 = pneg %p53
        $region34: #{tpu_custom_call.1} parent=31 // pred_check_branch
          %285 = sbr.rel (%p283) target = $region36
        $region35: #{tpu_custom_call.1} parent=31 // pred_region
          %s286 = sand.u32 %s21, 1
          %s287 = scalar_lea.sflag [#allocation4], %s286
          %s288 = sand.u32 %s43, 1
          %s289 = smul.addr %s288, 16
          %s290 = scalar_lea.vmem [#allocation3], %s289
          %s291 = smul.u32 2, %s28
          %293 = vsyncadd %s287, 0
          %s294 = smul.addr %s291, 8
          %s295 = scalar_lea.hbm %s0, %s294
          %s296 = sshll.u32 %s295, 4
          %s297 = int_to_ptr.hbm [resolvable:$true] %s296
          %s298 = sshll.u32 %s290, 4
          %s299 = int_to_ptr.vmem [resolvable:$true] %s298
          %304 = dma.hbm_to_vmem [thread:$0]  %s297, 256, %s299, %s287, 128, 128, 8
        $region36: #{tpu_custom_call.1} parent=31 // pred_fallthru
          _
        // Predicated region
        $region37: #{tpu_custom_call.1} parent=31 // pred_check
          %p305 = pneg %p163
        $region38: #{tpu_custom_call.1} parent=31 // pred_check_branch
          %307 = sbr.rel (%p305) target = $region40
        $region39: #{tpu_custom_call.1} parent=31 // pred_region
          %s308 = sand.u32 %s21, 1
          %s309 = scalar_lea.sflag [#allocation4], %s308
          %s310 = sand.u32 %s153, 1
          %s311 = smul.addr %s310, 64
          %s312 = scalar_lea.vmem [#allocation11], %s311
          %314 = vsyncadd %s309, 0
          %s315 = smul.addr %s29, 4
          %s316 = scalar_lea.hbm %s5, %s315
          %s317 = sshll.u32 %s316, 4
          %s318 = int_to_ptr.hbm [resolvable:$true] %s317
          %s319 = sshll.u32 %s312, 4
          %s320 = int_to_ptr.vmem [resolvable:$true] %s319
          %325 = dma.hbm_to_vmem [thread:$0]  %s318, 1024, %s320, %s309, 256, 64, 4
        $region40: #{tpu_custom_call.1} parent=31 // pred_fallthru
          _
        // Predicated region
        $region41: #{tpu_custom_call.1} parent=31 // pred_check
          %p326 = pneg %p189
        $region42: #{tpu_custom_call.1} parent=31 // pred_check_branch
          %328 = sbr.rel (%p326) target = $region44
        $region43: #{tpu_custom_call.1} parent=31 // pred_region
          %p329 = scmp.lt.s32.totalorder %s29, 3
          %s330 = scalar_select %p329, %s29, 3
          %s331 = scalar_lea.vmem %s6, %s330
        $region44: #{tpu_custom_call.1} parent=31 // pred_fallthru
          _
      $region32: #{tpu_custom_call.1} parent=5 // pred_fallthru
        _
      %p332 = scmp.le.s32.totalorder 1, %s21
      %p333 = scmp.lt.s32.totalorder %s21, 9
      %p334 = pnand %p332, %p333
      %p335 = pneg %p334
      // Predicated region
      $region45: #{tpu_custom_call.1} parent=5 // pred_check
        _
      $region46: #{tpu_custom_call.1} parent=5 // pred_check_branch
        %337 = sbr.rel (%p334) target = $region48
      $region47: #{tpu_custom_call.1} parent=5 // pred_region
        %s338 = ssub.s32 %s21, 1
        %s339 = sand.u32 %s26, 1
        %s340 = scalar_lea.sflag [#allocation4], %s339
        %s341 = sand.u32 %s46, 1
        %s342 = smul.addr %s341, 16
        %s343 = scalar_lea.vmem [#allocation3], %s342
        // Predicated region
        $region49: #{tpu_custom_call.1} parent=47 // pred_check
          %p344 = pneg %p59
        $region50: #{tpu_custom_call.1} parent=47 // pred_check_branch
          %346 = sbr.rel (%p344) target = $region52
        $region51: #{tpu_custom_call.1} parent=47 // pred_region
          %348 = dma.done %s340, 256
        $region52: #{tpu_custom_call.1} parent=47 // pred_fallthru
          _
        // Predicated region
        $region53: #{tpu_custom_call.1} parent=47 // pred_check
          %p349 = pneg %p80
        $region54: #{tpu_custom_call.1} parent=47 // pred_check_branch
          %351 = sbr.rel (%p349) target = $region56
        $region55: #{tpu_custom_call.1} parent=47 // pred_region
          %353 = dma.done [#allocation7], 2048
        $region56: #{tpu_custom_call.1} parent=47 // pred_fallthru
          _
        // Predicated region
        $region57: #{tpu_custom_call.1} parent=47 // pred_check
          %p354 = pneg %p122
        $region58: #{tpu_custom_call.1} parent=47 // pred_check_branch
          %356 = sbr.rel (%p354) target = $region60
        $region59: #{tpu_custom_call.1} parent=47 // pred_region
          %358 = dma.done [#allocation7], 16
        $region60: #{tpu_custom_call.1} parent=47 // pred_fallthru
          _
        // Predicated region
        $region61: #{tpu_custom_call.1} parent=47 // pred_check
          %p359 = pneg %p143
        $region62: #{tpu_custom_call.1} parent=47 // pred_check_branch
          %361 = sbr.rel (%p359) target = $region64
        $region63: #{tpu_custom_call.1} parent=47 // pred_region
          %363 = dma.done [#allocation10], 16
        $region64: #{tpu_custom_call.1} parent=47 // pred_fallthru
          _
        %s364 = sand.u32 %s26, 1
        %s365 = scalar_lea.sflag [#allocation4], %s364
        %s366 = sand.u32 %s156, 1
        %s367 = smul.addr %s366, 64
        %s368 = scalar_lea.vmem [#allocation11], %s367
        // Predicated region
        $region65: #{tpu_custom_call.1} parent=47 // pred_check
          %p369 = pneg %p169
        $region66: #{tpu_custom_call.1} parent=47 // pred_check_branch
          %371 = sbr.rel (%p369) target = $region68
        $region67: #{tpu_custom_call.1} parent=47 // pred_region
          %373 = dma.done %s365, 1024
        $region68: #{tpu_custom_call.1} parent=47 // pred_fallthru
          _
        %s374 = sand.u32 %s26, 1
        %s375 = scalar_lea.sflag [#allocation4], %s374
        %s376 = sand.u32 %s46, 1
        %s377 = smul.addr %s376, 16
        %s378 = scalar_lea.vmem [#allocation3], %s377
        %p379 = pneg %p59
        %p380 = pneg %p56
        %p381 = pneg %p80
        %p382 = pneg %p77
        %p383 = pneg %p101
        %p384 = pneg %p98
        %p385 = pneg %p122
        %p386 = pneg %p119
        %p387 = pneg %p143
        %p388 = pneg %p140
        %s389 = sand.u32 %s26, 1
        %s390 = scalar_lea.sflag [#allocation4], %s389
        %s391 = sand.u32 %s156, 1
        %s392 = smul.addr %s391, 64
        %s393 = scalar_lea.vmem [#allocation11], %s392
        %p394 = pneg %p169
        %p395 = pneg %p166
        %p396 = scmp.lt.s32.totalorder %s31, 3
        %s397 = scalar_select %p396, %s31, 3
        %s398 = scalar_lea.vmem %s6, %s397
        %p399 = pneg %p195
        %p400 = pneg %p192
        %p401 = pneg %p223
        %p402 = pneg %p220
        %s403 = sand.u32 %s210, 1
        %s404 = scalar_lea.sflag [#allocation5], %s403
        %s405 = sand.u32 %s210, 1
        %s406 = smul.addr %s405, 16
        %s407 = scalar_lea.vmem [#allocation12], %s406
        %s408 = smul.u32 2, %s30
        %p409 = scmp.lt.s32.totalorder %s31, 3
        %s410 = scalar_select %p409, %s31, 3
        %s411 = scalar_lea.vmem %s6, %s410
        %s412 = smul.u32 2, %s30
        %p413 = scmp.eq.s32.totalorder %s31, 0
        // Predicated region
        $region69: #{tpu_custom_call.1} parent=47 // pred_check
          %p414 = pneg %p413
        $region70: #{tpu_custom_call.1} parent=47 // pred_check_branch
          %416 = sbr.rel (%p414) target = $region72
        $region71: #{tpu_custom_call.1} parent=47 // pred_region
          %v417 = vld [vmem:[%s343] sm:$0xff]
          %v418 = vld [vmem:[%s343 + $0x8] sm:$0xff]
          %v419 = vld [vmem:[#allocation6] sm:$0xff]
          %v420 = vld [vmem:[#allocation6 + $0x8] sm:$0xff]
          %v421 = vld [vmem:[#allocation6 + $0x10] sm:$0xff]
          %v422 = vld [vmem:[#allocation6 + $0x18] sm:$0xff]
          %v423 = vld [vmem:[#allocation6 + $0x20] sm:$0xff]
          %v424 = vld [vmem:[#allocation6 + $0x28] sm:$0xff]
          %v425 = vld [vmem:[#allocation6 + $0x30] sm:$0xff]
          %v426 = vld [vmem:[#allocation6 + $0x38] sm:$0xff]
          %v427 = vld [vmem:[#allocation6 + $0x40] sm:$0xff]
          %v428 = vld [vmem:[#allocation6 + $0x48] sm:$0xff]
          %v429 = vld [vmem:[#allocation6 + $0x50] sm:$0xff]
          %v430 = vld [vmem:[#allocation6 + $0x58] sm:$0xff]
          %v431 = vld [vmem:[#allocation6 + $0x60] sm:$0xff]
          %v432 = vld [vmem:[#allocation6 + $0x68] sm:$0xff]
          %v433 = vld [vmem:[#allocation6 + $0x70] sm:$0xff]
          %v434 = vld [vmem:[#allocation6 + $0x78] sm:$0xff]
          %v435 = vld [vmem:[%s2] sm:$0x1]
          %v437 = vperm.slane %v435, 0
          %439 = vmatpush.msra.mxu0 %v434
          %440 = vmatpush.msra.mxu0 %v433
          %441 = vmatpush.msra.mxu0 %v432
          %442 = vmatpush.msra.mxu0 %v431
          %443 = vmatpush.msra.mxu0 %v430
          %444 = vmatpush.msra.mxu0 %v429
          %445 = vmatpush.msra.mxu0 %v428
          %446 = vmatpush.msra.mxu0 %v427
          %447 = vmatpush.msra.mxu0 %v426
          %448 = vmatpush.msra.mxu0 %v425
          %449 = vmatpush.msra.mxu0 %v424
          %450 = vmatpush.msra.mxu0 %v423
          %451 = vmatpush.msra.mxu0 %v422
          %452 = vmatpush.msra.mxu0 %v421
          %453 = vmatpush.msra.mxu0 %v420
          %454 = vmatpush.msra.mxu0 %v419
          %455 = vmatmul.f32.gmra.mxu0 %v417
          %v456 = vpop.f32.mrf.mxu0
          %v457 = vadd.f32 %v437, %v456
          %458 = vmatmul.f32.gmra.mxu0 %v418
          %v459 = vpop.f32.mrf.mxu0
          %v460 = vadd.f32 %v437, %v459
          %461 = vdwg.mxu0
          %v462 = vmul.f32 %v457, 0.5
          %v463 = vmul.f32 %v460, 0.5
          %v464 = vmul.f32 %v457, 0.70710677
          %v465 = vmul.f32 %v460, 0.70710677
          %v466 = vmul.f32 %v464, %v464
          %v467 = vmin.f32 16.0, %v466
          %v468 = vmul.f32 %v467, 2.1237322e-06
          %v469 = vadd.f32 %v468, 0.00028619796
          %v470 = vmul.f32 %v467, %v469
          %v471 = vadd.f32 %v470, 0.0036580483
          %v472 = vmul.f32 %v467, %v471
          %v473 = vadd.f32 %v472, 0.05243302
          %v474 = vmul.f32 %v467, %v473
          %v475 = vadd.f32 %v474, 0.18741608
          %v476 = vmul.f32 %v467, %v475
          %v477 = vadd.f32 %v476, 1.1283791
          %v478 = vmul.f32 %v464, %v477
          %v479 = vmul.f32 %v467, 3.8918573e-05
          %v480 = vadd.f32 %v479, 0.001143296
          %v481 = vmul.f32 %v467, %v480
          %v482 = vadd.f32 %v481, 0.014752088
          %v483 = vmul.f32 %v467, %v482
          %v484 = vadd.f32 %v483, 0.112945676
          %v485 = vmul.f32 %v467, %v484
          %v486 = vadd.f32 %v485, 0.4994258
          %v487 = vmul.f32 %v467, %v486
          %v488 = vadd.f32 %v487, 1.0
          %v489 = vrcp.pop %v488
          %v490 = vmul.f32 %v488, %v489
          %v491 = vsub.f32 1.0, %v490
          %v492 = vmul.f32 %v489, %v491
          %v493 = vadd.f32 %v489, %v492
          %vm494 = vweird.f32 %v488
          %vm495 = vweird.f32 %v489
          %vm496 = vmor %vm494, %vm495
          %v497 = vsel %vm496, %v489, %v493
          %v498 = vand.u32 2147483647, %v488
          %vm499 = vcmp.eq.f32.partialorder %v498, 8.507059e+37
          %v500 = vand.u32 %v488, 2147483648
          %v501 = vor.u32 1.1754944e-38, %v500
          %v502 = vsel %vm499, %v501, %v497
          %v503 = vmul.f32 %v478, %v502
          %v504 = vmin.f32 %v503, 1.0
          %v505 = vmax.f32 %v504, -1.0
          %v506 = vmul.f32 %v465, %v465
          %v507 = vmin.f32 16.0, %v506
          %v508 = vmul.f32 %v507, 2.1237322e-06
          %v509 = vadd.f32 %v508, 0.00028619796
          %v510 = vmul.f32 %v507, %v509
          %v511 = vadd.f32 %v510, 0.0036580483
          %v512 = vmul.f32 %v507, %v511
          %v513 = vadd.f32 %v512, 0.05243302
          %v514 = vmul.f32 %v507, %v513
          %v515 = vadd.f32 %v514, 0.18741608
          %v516 = vmul.f32 %v507, %v515
          %v517 = vadd.f32 %v516, 1.1283791
          %v518 = vmul.f32 %v465, %v517
          %v519 = vmul.f32 %v507, 3.8918573e-05
          %v520 = vadd.f32 %v519, 0.001143296
          %v521 = vmul.f32 %v507, %v520
          %v522 = vadd.f32 %v521, 0.014752088
          %v523 = vmul.f32 %v507, %v522
          %v524 = vadd.f32 %v523, 0.112945676
          %v525 = vmul.f32 %v507, %v524
          %v526 = vadd.f32 %v525, 0.4994258
          %v527 = vmul.f32 %v507, %v526
          %v528 = vadd.f32 %v527, 1.0
          %v529 = vrcp.pop %v528
          %v530 = vmul.f32 %v528, %v529
          %v531 = vsub.f32 1.0, %v530
          %v532 = vmul.f32 %v529, %v531
          %v533 = vadd.f32 %v529, %v532
          %vm534 = vweird.f32 %v528
          %vm535 = vweird.f32 %v529
          %vm536 = vmor %vm534, %vm535
          %v537 = vsel %vm536, %v529, %v533
          %v538 = vand.u32 2147483647, %v528
          %vm539 = vcmp.eq.f32.partialorder %v538, 8.507059e+37
          %v540 = vand.u32 %v528, 2147483648
          %v541 = vor.u32 1.1754944e-38, %v540
          %v542 = vsel %vm539, %v541, %v537
          %v543 = vmul.f32 %v518, %v542
          %v544 = vmin.f32 %v543, 1.0
          %v545 = vmax.f32 %v544, -1.0
          %v546 = vadd.f32 %v505, 1.0
          %v547 = vadd.f32 %v545, 1.0
          %v548 = vmul.f32 %v462, %v546
          %v549 = vmul.f32 %v463, %v547
          %550 = vadd.xlane.f32.xlu0 %v548
          %v551 = vpop.xlane.xlu0 %550
          %552 = vadd.xlane.f32.xlu0 %v549
          %v553 = vpop.xlane.xlu0 %552
          %v554 = vrcp.pop 128.0
          %v555 = vmul.f32 128.0, %v554
          %v556 = vsub.f32 1.0, %v555
          %v557 = vmul.f32 %v554, %v556
          %v558 = vadd.f32 %v554, %v557
          %vm559 = vweird.f32 %v554
          %v560 = vsel %vm559, %v554, %v558
          %v561 = vmul.f32 %v551, %v560
          %v562 = vmul.f32 %v553, %v560
          %v563 = vsub.f32 %v548, %v561
          %v564 = vsub.f32 %v549, %v562
          %v565 = vmul.f32 %v563, %v563
          %v566 = vmul.f32 %v564, %v564
          %567 = vadd.xlane.f32.xlu0 %v565
          %v568 = vpop.xlane.xlu0 %567
          %569 = vadd.xlane.f32.xlu0 %v566
          %v570 = vpop.xlane.xlu0 %569
          %v571 = vmul.f32 %v568, %v560
          %v572 = vmul.f32 %v570, %v560
          %v573 = vadd.f32 %v571, 1e-12
          %v574 = vadd.f32 %v572, 1e-12
          %v575 = vrsqrt.pop %v573
          %v576 = vmul.f32 %v575, %v573
          %v577 = vmul.f32 %v576, %v575
          %v578 = vmul.f32 0.5, %v577
          %v579 = vsub.f32 1.5, %v578
          %v580 = vmul.f32 %v575, %v579
          %vm581 = vweird.f32 %v573
          %vm582 = vweird.f32 %v575
          %vm583 = vmor %vm581, %vm582
          %v584 = vsel %vm583, %v575, %v580
          %v585 = vrsqrt.pop %v574
          %v586 = vmul.f32 %v585, %v574
          %v587 = vmul.f32 %v586, %v585
          %v588 = vmul.f32 0.5, %v587
          %v589 = vsub.f32 1.5, %v588
          %v590 = vmul.f32 %v585, %v589
          %vm591 = vweird.f32 %v574
          %vm592 = vweird.f32 %v585
          %vm593 = vmor %vm591, %vm592
          %v594 = vsel %vm593, %v585, %v590
          %v595 = vmul.f32 %v563, %v584
          %v596 = vmul.f32 %v564, %v594
          %v597 = vld [vmem:[#allocation8] sm:$0x1]
          %v599 = vperm.slane %v597, 0
          %v601 = vmul.f32 %v595, %v599
          %v602 = vmul.f32 %v596, %v599
          %v603 = vld [vmem:[#allocation9] sm:$0x1]
          %v605 = vperm.slane %v603, 0
          %v607 = vadd.f32 %v601, %v605
          %v608 = vadd.f32 %v602, %v605
          %v609 = vpack.c.bf16 %v607, %v607
          %v610 = vpack.c.bf16 %v608, %v608
          %611 = vst [vmem:[#allocation2] sm:$0xf] %v609
          %612 = vst [vmem:[#allocation2 + $0x4] sm:$0xf] %v610
        $region72: #{tpu_custom_call.1} parent=47 // pred_fallthru
          _
        %v613 = vld [vmem:[#allocation2] sm:$0xf]
        %v614 = vld [vmem:[#allocation2 + $0x4] sm:$0xf]
        %v615 = vld [vmem:[%s368] sm:$0xf]
        %v616 = vld [vmem:[%s368 + $0x4] sm:$0xf]
        %v617 = vld [vmem:[%s368 + $0x8] sm:$0xf]
        %v618 = vld [vmem:[%s368 + $0xc] sm:$0xf]
        %v619 = vld [vmem:[%s368 + $0x10] sm:$0xf]
        %v620 = vld [vmem:[%s368 + $0x14] sm:$0xf]
        %v621 = vld [vmem:[%s368 + $0x18] sm:$0xf]
        %v622 = vld [vmem:[%s368 + $0x1c] sm:$0xf]
        %v623 = vld [vmem:[%s368 + $0x20] sm:$0xf]
        %v624 = vld [vmem:[%s368 + $0x24] sm:$0xf]
        %v625 = vld [vmem:[%s368 + $0x28] sm:$0xf]
        %v626 = vld [vmem:[%s368 + $0x2c] sm:$0xf]
        %v627 = vld [vmem:[%s368 + $0x30] sm:$0xf]
        %v628 = vld [vmem:[%s368 + $0x34] sm:$0xf]
        %v629 = vld [vmem:[%s368 + $0x38] sm:$0xf]
        %v630 = vld [vmem:[%s368 + $0x3c] sm:$0xf]
        %v631 = vld [vmem:[%s411] sm:$0x1]
        %v633 = vperm.slane %v631, 0
        %v637 = vunpack.c.l.b16 %v613
        %v638 = vunpack.c.l.b16 %v614
        %v639 = vpack.c.b16 %v638, %v637
        %v657 = vunpack.c.l.b16 %v615
        %v658 = vunpack.c.l.b16 %v616
        %v659 = vunpack.c.l.b16 %v617
        %v660 = vunpack.c.l.b16 %v618
        %v661 = vunpack.c.l.b16 %v619
        %v662 = vunpack.c.l.b16 %v620
        %v663 = vunpack.c.l.b16 %v621
        %v664 = vunpack.c.l.b16 %v622
        %v665 = vunpack.c.l.b16 %v623
        %v666 = vunpack.c.l.b16 %v624
        %v667 = vunpack.c.l.b16 %v625
        %v668 = vunpack.c.l.b16 %v626
        %v669 = vunpack.c.l.b16 %v627
        %v670 = vunpack.c.l.b16 %v628
        %v671 = vunpack.c.l.b16 %v629
        %v672 = vunpack.c.l.b16 %v630
        %v673 = vpack.c.b16 %v658, %v657
        %v674 = vpack.c.b16 %v660, %v659
        %v675 = vpack.c.b16 %v662, %v661
        %v676 = vpack.c.b16 %v664, %v663
        %v677 = vpack.c.b16 %v666, %v665
        %v678 = vpack.c.b16 %v668, %v667
        %v679 = vpack.c.b16 %v670, %v669
        %v680 = vpack.c.b16 %v672, %v671
        %689 = vmatpush.bf16.msra.mxu0 %v680
        %690 = vmatpush.bf16.msra.mxu0 %v679
        %691 = vmatpush.bf16.msra.mxu0 %v678
        %692 = vmatpush.bf16.msra.mxu0 %v677
        %693 = vmatpush.bf16.msra.mxu0 %v676
        %694 = vmatpush.bf16.msra.mxu0 %v675
        %695 = vmatpush.bf16.msra.mxu0 %v674
        %696 = vmatpush.bf16.msra.mxu0 %v673
        %697 = vmatmul.bf16.gmra.mxu0 %v639
        %v698 = vpop.f32.mrf.mxu0
        %v699 = vadd.f32 %v633, %v698
        %v700 = vpop.f32.mrf.mxu0
        %v701 = vadd.f32 %v633, %v700
        %702 = vdwg.mxu0
        %703 = vst [vmem:[%s407] sm:$0xff] %v699
        %704 = vst [vmem:[%s407 + $0x8] sm:$0xff] %v701
        %s705 = sand.u32 %s210, 1
        %s706 = scalar_lea.sflag [#allocation5], %s705
        %s707 = sand.u32 %s210, 1
        %s708 = smul.addr %s707, 16
        %s709 = scalar_lea.vmem [#allocation12], %s708
        // Predicated region
        $region73: #{tpu_custom_call.1} parent=47 // pred_check
          %p710 = pneg %p220
        $region74: #{tpu_custom_call.1} parent=47 // pred_check_branch
          %712 = sbr.rel (%p710) target = $region76
        $region75: #{tpu_custom_call.1} parent=47 // pred_region
          %s713 = smul.u32 2, %s30
          %715 = vsyncadd %s706, 0
          %s716 = smul.addr %s713, 4
          %s717 = sadd.s32 %s31, %s716
          %s718 = smul.addr %s717, 8
          %s719 = scalar_lea.hbm %s7, %s718
          %s720 = sshll.u32 %s709, 4
          %s721 = int_to_ptr.vmem [resolvable:$true] %s720
          %s722 = sshll.u32 %s719, 4
          %s723 = int_to_ptr.hbm [resolvable:$true] %s722
          %728 = dma.vmem_to_hbm [thread:$0]  %s721, 256, %s723, %s706, 128, 512, 8
        $region76: #{tpu_custom_call.1} parent=47 // pred_fallthru
          _
      $region48: #{tpu_custom_call.1} parent=5 // pred_fallthru
        _
      %p729 = scmp.le.s32.totalorder 2, %s21
      // Predicated region
      $region77: #{tpu_custom_call.1} parent=5 // pred_check
        %p730 = pneg %p729
      $region78: #{tpu_custom_call.1} parent=5 // pred_check_branch
        %732 = sbr.rel (%p730) target = $region80
      $region79: #{tpu_custom_call.1} parent=5 // pred_region
        %s733 = ssub.s32 %s21, 2
        // Predicated region
        $region81: #{tpu_custom_call.1} parent=79 // pred_check
          %p734 = pneg %p226
        $region82: #{tpu_custom_call.1} parent=79 // pred_check_branch
          %736 = sbr.rel (%p734) target = $region84
        $region83: #{tpu_custom_call.1} parent=79 // pred_region
          %s737 = sand.u32 %s211, 1
          %s738 = scalar_lea.sflag [#allocation5], %s737
          %s739 = sand.u32 %s211, 1
          %s740 = smul.addr %s739, 16
          %s741 = scalar_lea.vmem [#allocation12], %s740
          %743 = dma.done %s738, 256
        $region84: #{tpu_custom_call.1} parent=79 // pred_fallthru
          _
      $region80: #{tpu_custom_call.1} parent=5 // pred_fallthru
        _
    $region6: #{tpu_custom_call.1} parent=1 // loop_footer
      %s25 = sadd.s32 1, %s21
    $region7: #{tpu_custom_call.1} parent=1 // loop_footer_branch
      %20 = sbr.rel target = $region3
    $region8: #{tpu_custom_call.1} parent=1 // loop_exit
      _
    %744 = vsyncpa [#allocation4], 1
    %s745 = scalar_lea.sflag [#allocation4], 1
    %746 = vsyncpa %s745, 1
    %747 = vsyncpa [#allocation7], 1
    %748 = vsyncpa [#allocation10], 1
    %749 = vsyncpa [#allocation5], 1
    %s750 = scalar_lea.sflag [#allocation5], 1
    %751 = vsyncpa %s750, 1

</llo_original>
